<compile_context>
chip_gen: v6e
topology: v6e:2x2x1
jax: 0.10.0
libtpu: 0.0.40
codegen_flags: <defaults>
</compile_context>

<pallas_src>
import functools

import jax
import jax.numpy as jnp
from jax.experimental import pallas as pl
from jax.experimental.pallas import tpu as pltpu


def neumf_kernel(eu_ref, ei_ref,
                 wu_ref, wi_ref, w2_ref, w3_ref, w4_ref,
                 bgu_ref, bgi_ref, b1_ref, b2_ref, b3_ref, cout_ref,
                 o_ref):
    """All activations are (feature, TB); TB (batch) lives on lanes."""
    H1 = b1_ref.shape[0]                      # D // 2 (static)

    # Fused user/item matmuls: rows [0, H1) = MLP fc1 half, row H1 = (scaled) GMF head.
    fu = jnp.dot(wu_ref[...], eu_ref[...], preferred_element_type=jnp.float32)  # (H1+1, TB)
    fi = jnp.dot(wi_ref[...], ei_ref[...], preferred_element_type=jnp.float32)  # (H1+1, TB)

    # ---- GMF branch (already scaled by head weight wh0 via wu/bgu folding) ----
    gmf = (fu[H1:H1 + 1, :] + bgu_ref[...]) * (fi[H1:H1 + 1, :] + bgi_ref[...])  # (1, TB)

    # ---- MLP branch ----
    h = jnp.maximum(fu[:H1, :] + fi[:H1, :] + b1_ref[...], 0.0)                  # (H1, TB)
    h = jnp.maximum(
        jnp.dot(w2_ref[...], h.astype(w2_ref.dtype),
                preferred_element_type=jnp.float32) + b2_ref[...], 0.0)          # (D/4, TB)
    h = jnp.maximum(
        jnp.dot(w3_ref[...], h.astype(w3_ref.dtype),
                preferred_element_type=jnp.float32) + b3_ref[...], 0.0)          # (D/8, TB)
    mlp = jnp.dot(w4_ref[...], h.astype(w4_ref.dtype),
                  preferred_element_type=jnp.float32)                            # (1, TB), scaled by wh1

    # ---- head: wh0*gmf + wh1*mlp + (wh1*b4 + b_head), already folded into gmf/mlp/cout ----
    o_ref[...] = jax.nn.sigmoid(gmf + mlp + cout_ref[...])                       # (1, TB)


@functools.partial(jax.jit, static_argnames=("tb", "compute_dtype"))
def neumf_forward(user_idx, item_idx, params, *, tb=1024, compute_dtype=jnp.float32):
    assert tb % 128 == 0
    B = user_idx.shape[0]

    # Batch tile: large (>=128, multiple of 128), clamped to the (padded) batch.
    tb_eff = min(tb, 128 * pl.cdiv(B, 128))
    n_tiles = pl.cdiv(B, tb_eff)
    B_pad = n_tiles * tb_eff
    if B_pad != B:
        pad = B_pad - B
        user_idx = jnp.concatenate([user_idx, jnp.zeros((pad,), user_idx.dtype)])
        item_idx = jnp.concatenate([item_idx, jnp.zeros((pad,), item_idx.dtype)])

    # Embedding gathers (JAX glue), presented transposed: (D, B_pad), batch on lanes.
    emb_u_t = params["emb_user"][user_idx].T.astype(compute_dtype)
    emb_i_t = params["emb_item"][item_idx].T.astype(compute_dtype)
    D = emb_u_t.shape[0]
    H1 = D // 2

    # --- one-time weight folding (f32), then cast to compute dtype -----------------------
    wh0 = params["head_w"][0, 0]              # NeuMF head Linear(2,1): logit = wh0*gmf + wh1*mlp + bh
    wh1 = params["head_w"][0, 1]
    # Fuse GMF head + fc1 user/item halves into one (1+H1, D) weight per embedding.
    wu = jnp.concatenate([params["fc1_w"][:, :D], wh0 * params["fc_user_w"]], axis=0)
    wi = jnp.concatenate([params["fc1_w"][:, D:], params["fc_item_w"]], axis=0)
    w2 = params["fc2_w"]
    w3 = params["fc3_w"]
    w4 = wh1 * params["fc4_w"]
    wu, wi, w2, w3, w4 = (w.astype(compute_dtype) for w in (wu, wi, w2, w3, w4))

    bgu = (wh0 * params["fc_user_b"]).reshape(1, 1).astype(jnp.float32)
    bgi = params["fc_item_b"].reshape(1, 1).astype(jnp.float32)
    b1 = params["fc1_b"].reshape(H1, 1).astype(jnp.float32)
    b2 = params["fc2_b"].reshape(-1, 1).astype(jnp.float32)
    b3 = params["fc3_b"].reshape(-1, 1).astype(jnp.float32)
    cout = (wh1 * params["fc4_b"] + params["head_b"]).reshape(1, 1).astype(jnp.float32)

    weights = [wu, wi, w2, w3, w4, bgu, bgi, b1, b2, b3, cout]

    full = lambda a: pl.BlockSpec(a.shape, lambda i, _nd=a.ndim: (0,) * _nd)
    emb_spec = pl.BlockSpec((D, tb_eff), lambda i: (0, i))

    out = pl.pallas_call(
        neumf_kernel,
        out_shape=jax.ShapeDtypeStruct((n_tiles, tb_eff), jnp.float32),
        grid_spec=pltpu.PrefetchScalarGridSpec(
            num_scalar_prefetch=0,
            grid=(n_tiles,),
            in_specs=[emb_spec, emb_spec] + [full(w) for w in weights],
            out_specs=pl.BlockSpec((1, tb_eff), lambda i: (i, 0)),   # lane-dense store
        ),
        compiler_params=pltpu.CompilerParams(dimension_semantics=("parallel",)),
    )(emb_u_t, emb_i_t, *weights)

    return out.reshape(-1)[:B]   # matches prediction.squeeze() in PyTorch -> (B,)


def init_params(key, num_users, num_items, D):
    ks = jax.random.split(key, 16)
    s = 0.1
    w = lambda k, shape: jax.random.normal(k, shape, jnp.float32) * s
    # PyTorch nn.Linear convention: weight (out_features, in_features), bias (out_features,)
    return {
        "emb_user": w(ks[0], (num_users, D)),
        "emb_item": w(ks[1], (num_items, D)),
        "fc_user_w": w(ks[2], (1, D)), "fc_user_b": w(ks[3], (1,)),
        "fc_item_w": w(ks[4], (1, D)), "fc_item_b": w(ks[5], (1,)),
        "fc1_w": w(ks[6], (D // 2, 2 * D)), "fc1_b": w(ks[7], (D // 2,)),
        "fc2_w": w(ks[8], (D // 4, D // 2)), "fc2_b": w(ks[9], (D // 4,)),
        "fc3_w": w(ks[10], (D // 8, D // 4)), "fc3_b": w(ks[11], (D // 8,)),
        "fc4_w": w(ks[12], (1, D // 8)), "fc4_b": w(ks[13], (1,)),
        "head_w": w(ks[14], (1, 2)), "head_b": w(ks[15], (1,)),
    }


def neumf_reference(user_idx, item_idx, p):
    """Pure-JAX mirror of the PyTorch NeuMF forward."""
    eu = p["emb_user"][user_idx]
    ei = p["emb_item"][item_idx]
    gmf = (eu @ p["fc_user_w"].T + p["fc_user_b"]) * (ei @ p["fc_item_w"].T + p["fc_item_b"])
    v = jnp.concatenate([eu, ei], axis=-1)
    h = jax.nn.relu(v @ p["fc1_w"].T + p["fc1_b"])
    h = jax.nn.relu(h @ p["fc2_w"].T + p["fc2_b"])
    h = jax.nn.relu(h @ p["fc3_w"].T + p["fc3_b"])
    mlp = h @ p["fc4_w"].T + p["fc4_b"]
    cat = jnp.concatenate([gmf, mlp], axis=-1)
    return jax.nn.sigmoid(cat @ p["head_w"].T + p["head_b"]).squeeze(-1)


if __name__ == "__main__":
    num_users, num_items, D, B = 40, 60, 32, 200   # B not a multiple of 128 -> exercises padding

    key = jax.random.PRNGKey(0)
    k_u, k_i, k_p = jax.random.split(key, 3)
    user_idx = jax.random.randint(k_u, (B,), 0, num_users, dtype=jnp.int32)
    item_idx = jax.random.randint(k_i, (B,), 0, num_items, dtype=jnp.int32)
    params = init_params(k_p, num_users, num_items, D)

    ref = neumf_reference(user_idx, item_idx, params)

    # f32 path (all chips)
    pred = jax.block_until_ready(neumf_forward(user_idx, item_idx, params))
    assert pred.shape == (B,)
    assert jnp.allclose(pred, ref, atol=1e-5, rtol=1e-5)

    # bf16 embeddings/weights (v6e/v7x: halves HBM traffic; accumulation stays f32)
    pred_bf16 = jax.block_until_ready(
        neumf_forward(user_idx, item_idx, params, compute_dtype=jnp.bfloat16))
    assert pred_bf16.shape == (B,)
    assert jnp.allclose(pred_bf16, ref, atol=3e-2, rtol=3e-2)

    print("KERNEL_OK")
</pallas_src>

<mosaic_0001>
module attributes {stable_mosaic.version = 11 : i64} {
  func.func @neumf_kernel(%arg0: i32, %arg1: memref<32x256xf32, #tpu.memory_space<vmem>>, %arg2: memref<32x256xf32, #tpu.memory_space<vmem>>, %arg3: memref<17x32xf32, #tpu.memory_space<vmem>>, %arg4: memref<17x32xf32, #tpu.memory_space<vmem>>, %arg5: memref<8x16xf32, #tpu.memory_space<vmem>>, %arg6: memref<4x8xf32, #tpu.memory_space<vmem>>, %arg7: memref<1x4xf32, #tpu.memory_space<vmem>>, %arg8: memref<1x1xf32, #tpu.memory_space<vmem>>, %arg9: memref<1x1xf32, #tpu.memory_space<vmem>>, %arg10: memref<16x1xf32, #tpu.memory_space<vmem>>, %arg11: memref<8x1xf32, #tpu.memory_space<vmem>>, %arg12: memref<4x1xf32, #tpu.memory_space<vmem>>, %arg13: memref<1x1xf32, #tpu.memory_space<vmem>>, %arg14: memref<1x256xf32, #tpu.memory_space<vmem>>) attributes {dimension_semantics = [#tpu.dimension_semantics<parallel>], iteration_bounds = array<i64: 1>, scalar_prefetch = 0 : i64, scratch_operands = 0 : i64, tpu.core_type = #tpu.core_type<tc>, window_params = [{transform_indices = @transform_0, window_bounds = array<i64: 32, 256>}, {transform_indices = @transform_1, window_bounds = array<i64: 32, 256>}, {pipeline_mode = #tpu.pipeline_mode<synchronous>, transform_indices = @transform_2, window_bounds = array<i64: 17, 32>}, {pipeline_mode = #tpu.pipeline_mode<synchronous>, transform_indices = @transform_3, window_bounds = array<i64: 17, 32>}, {pipeline_mode = #tpu.pipeline_mode<synchronous>, transform_indices = @transform_4, window_bounds = array<i64: 8, 16>}, {pipeline_mode = #tpu.pipeline_mode<synchronous>, transform_indices = @transform_5, window_bounds = array<i64: 4, 8>}, {pipeline_mode = #tpu.pipeline_mode<synchronous>, transform_indices = @transform_6, window_bounds = array<i64: 1, 4>}, {pipeline_mode = #tpu.pipeline_mode<synchronous>, transform_indices = @transform_7, window_bounds = array<i64: 1, 1>}, {pipeline_mode = #tpu.pipeline_mode<synchronous>, transform_indices = @transform_8, window_bounds = array<i64: 1, 1>}, {pipeline_mode = #tpu.pipeline_mode<synchronous>, transform_indices = @transform_9, window_bounds = array<i64: 16, 1>}, {pipeline_mode = #tpu.pipeline_mode<synchronous>, transform_indices = @transform_10, window_bounds = array<i64: 8, 1>}, {pipeline_mode = #tpu.pipeline_mode<synchronous>, transform_indices = @transform_11, window_bounds = array<i64: 4, 1>}, {pipeline_mode = #tpu.pipeline_mode<synchronous>, transform_indices = @transform_12, window_bounds = array<i64: 1, 1>}, {transform_indices = @transform_13, window_bounds = array<i64: 1, 256>}]} {
    %c0 = arith.constant 0 : index
    %c0_0 = arith.constant 0 : index
    %0 = vector.load %arg3[%c0, %c0_0] : memref<17x32xf32, #tpu.memory_space<vmem>>, vector<17x32xf32>
    %c0_1 = arith.constant 0 : index
    %c0_2 = arith.constant 0 : index
    %1 = vector.load %arg1[%c0_1, %c0_2] : memref<32x256xf32, #tpu.memory_space<vmem>>, vector<32x256xf32>
    %cst = arith.constant dense<0.000000e+00> : vector<17x256xf32>
    %2 = tpu.matmul %0, %1, %cst {dimension_numbers = #tpu.dot_dimension_numbers<[1], [0], [0], [1], [0, 0, 1, 1], [], []>} : vector<17x32xf32>, vector<32x256xf32>, vector<17x256xf32> -> vector<17x256xf32>
    %c0_3 = arith.constant 0 : index
    %c0_4 = arith.constant 0 : index
    %3 = vector.load %arg4[%c0_3, %c0_4] : memref<17x32xf32, #tpu.memory_space<vmem>>, vector<17x32xf32>
    %c0_5 = arith.constant 0 : index
    %c0_6 = arith.constant 0 : index
    %4 = vector.load %arg2[%c0_5, %c0_6] : memref<32x256xf32, #tpu.memory_space<vmem>>, vector<32x256xf32>
    %cst_7 = arith.constant dense<0.000000e+00> : vector<17x256xf32>
    %5 = tpu.matmul %3, %4, %cst_7 {dimension_numbers = #tpu.dot_dimension_numbers<[1], [0], [0], [1], [0, 0, 1, 1], [], []>} : vector<17x32xf32>, vector<32x256xf32>, vector<17x256xf32> -> vector<17x256xf32>
    %6 = vector.extract_strided_slice %2 {offsets = [16, 0], sizes = [1, 256], strides = [1, 1]} : vector<17x256xf32> to vector<1x256xf32>
    %c0_8 = arith.constant 0 : index
    %c0_9 = arith.constant 0 : index
    %7 = vector.load %arg8[%c0_8, %c0_9] : memref<1x1xf32, #tpu.memory_space<vmem>>, vector<1x1xf32>
    %8 = vector.broadcast %7 : vector<1x1xf32> to vector<1x256xf32>
    %9 = arith.addf %6, %8 : vector<1x256xf32>
    %10 = vector.extract_strided_slice %5 {offsets = [16, 0], sizes = [1, 256], strides = [1, 1]} : vector<17x256xf32> to vector<1x256xf32>
    %c0_10 = arith.constant 0 : index
    %c0_11 = arith.constant 0 : index
    %11 = vector.load %arg9[%c0_10, %c0_11] : memref<1x1xf32, #tpu.memory_space<vmem>>, vector<1x1xf32>
    %12 = vector.broadcast %11 : vector<1x1xf32> to vector<1x256xf32>
    %13 = arith.addf %10, %12 : vector<1x256xf32>
    %14 = arith.mulf %9, %13 : vector<1x256xf32>
    %15 = vector.extract_strided_slice %2 {offsets = [0, 0], sizes = [16, 256], strides = [1, 1]} : vector<17x256xf32> to vector<16x256xf32>
    %16 = vector.extract_strided_slice %5 {offsets = [0, 0], sizes = [16, 256], strides = [1, 1]} : vector<17x256xf32> to vector<16x256xf32>
    %17 = arith.addf %15, %16 : vector<16x256xf32>
    %c0_12 = arith.constant 0 : index
    %c0_13 = arith.constant 0 : index
    %18 = vector.load %arg10[%c0_12, %c0_13] : memref<16x1xf32, #tpu.memory_space<vmem>>, vector<16x1xf32>
    %19 = vector.broadcast %18 : vector<16x1xf32> to vector<16x256xf32>
    %20 = arith.addf %17, %19 : vector<16x256xf32>
    %cst_14 = arith.constant 0.000000e+00 : f32
    %21 = vector.broadcast %cst_14 : f32 to vector<16x256xf32>
    %22 = arith.maximumf %20, %21 : vector<16x256xf32>
    %c0_15 = arith.constant 0 : index
    %c0_16 = arith.constant 0 : index
    %23 = vector.load %arg5[%c0_15, %c0_16] : memref<8x16xf32, #tpu.memory_space<vmem>>, vector<8x16xf32>
    %cst_17 = arith.constant dense<0.000000e+00> : vector<8x256xf32>
    %24 = tpu.matmul %23, %22, %cst_17 {dimension_numbers = #tpu.dot_dimension_numbers<[1], [0], [0], [1], [0, 0, 1, 1], [], []>} : vector<8x16xf32>, vector<16x256xf32>, vector<8x256xf32> -> vector<8x256xf32>
    %c0_18 = arith.constant 0 : index
    %c0_19 = arith.constant 0 : index
    %25 = vector.load %arg11[%c0_18, %c0_19] : memref<8x1xf32, #tpu.memory_space<vmem>>, vector<8x1xf32>
    %26 = vector.broadcast %25 : vector<8x1xf32> to vector<8x256xf32>
    %27 = arith.addf %24, %26 : vector<8x256xf32>
    %cst_20 = arith.constant 0.000000e+00 : f32
    %28 = vector.broadcast %cst_20 : f32 to vector<8x256xf32>
    %29 = arith.maximumf %27, %28 : vector<8x256xf32>
    %c0_21 = arith.constant 0 : index
    %c0_22 = arith.constant 0 : index
    %30 = vector.load %arg6[%c0_21, %c0_22] : memref<4x8xf32, #tpu.memory_space<vmem>>, vector<4x8xf32>
    %cst_23 = arith.constant dense<0.000000e+00> : vector<4x256xf32>
    %31 = tpu.matmul %30, %29, %cst_23 {dimension_numbers = #tpu.dot_dimension_numbers<[1], [0], [0], [1], [0, 0, 1, 1], [], []>} : vector<4x8xf32>, vector<8x256xf32>, vector<4x256xf32> -> vector<4x256xf32>
    %c0_24 = arith.constant 0 : index
    %c0_25 = arith.constant 0 : index
    %32 = vector.load %arg12[%c0_24, %c0_25] : memref<4x1xf32, #tpu.memory_space<vmem>>, vector<4x1xf32>
    %33 = vector.broadcast %32 : vector<4x1xf32> to vector<4x256xf32>
    %34 = arith.addf %31, %33 : vector<4x256xf32>
    %cst_26 = arith.constant 0.000000e+00 : f32
    %35 = vector.broadcast %cst_26 : f32 to vector<4x256xf32>
    %36 = arith.maximumf %34, %35 : vector<4x256xf32>
    %c0_27 = arith.constant 0 : index
    %c0_28 = arith.constant 0 : index
    %37 = vector.load %arg7[%c0_27, %c0_28] : memref<1x4xf32, #tpu.memory_space<vmem>>, vector<1x4xf32>
    %cst_29 = arith.constant dense<0.000000e+00> : vector<1x256xf32>
    %38 = tpu.matmul %37, %36, %cst_29 {dimension_numbers = #tpu.dot_dimension_numbers<[1], [0], [0], [1], [0, 0, 1, 1], [], []>} : vector<1x4xf32>, vector<4x256xf32>, vector<1x256xf32> -> vector<1x256xf32>
    %39 = arith.addf %14, %38 : vector<1x256xf32>
    %c0_30 = arith.constant 0 : index
    %c0_31 = arith.constant 0 : index
    %40 = vector.load %arg13[%c0_30, %c0_31] : memref<1x1xf32, #tpu.memory_space<vmem>>, vector<1x1xf32>
    %41 = vector.broadcast %40 : vector<1x1xf32> to vector<1x256xf32>
    %42 = arith.addf %39, %41 : vector<1x256xf32>
    %43 = arith.negf %42 : vector<1x256xf32>
    %44 = math.exp %43 : vector<1x256xf32>
    %cst_32 = arith.constant 1.000000e+00 : f32
    %45 = vector.broadcast %cst_32 : f32 to vector<1x256xf32>
    %46 = arith.addf %45, %44 : vector<1x256xf32>
    %47 = arith.divf %45, %46 : vector<1x256xf32>
    %c0_33 = arith.constant 0 : index
    %c0_34 = arith.constant 0 : index
    %48 = vector.load %arg14[%c0_33, %c0_34] : memref<1x256xf32, #tpu.memory_space<vmem>>, vector<1x256xf32>
    tpu.vector_store %arg14[%c0_33, %c0_34], %47 {strides = array<i32>} : memref<1x256xf32, #tpu.memory_space<vmem>>, vector<1x256xf32>,
    return
  }
  func.func @transform_0(%arg0: i32) -> (i32, i32) {
    %c0_i32 = arith.constant 0 : i32
    %c0_i32_0 = arith.constant 0 : i32
    return %c0_i32, %arg0 : i32, i32
  }
  func.func @transform_1(%arg0: i32) -> (i32, i32) {
    %c0_i32 = arith.constant 0 : i32
    %c0_i32_0 = arith.constant 0 : i32
    return %c0_i32, %arg0 : i32, i32
  }
  func.func @transform_2(%arg0: i32) -> (i32, i32) {
    %c0_i32 = arith.constant 0 : i32
    %c0_i32_0 = arith.constant 0 : i32
    %c0_i32_1 = arith.constant 0 : i32
    return %c0_i32, %c0_i32_0 : i32, i32
  }
  func.func @transform_3(%arg0: i32) -> (i32, i32) {
    %c0_i32 = arith.constant 0 : i32
    %c0_i32_0 = arith.constant 0 : i32
    %c0_i32_1 = arith.constant 0 : i32
    return %c0_i32, %c0_i32_0 : i32, i32
  }
  func.func @transform_4(%arg0: i32) -> (i32, i32) {
    %c0_i32 = arith.constant 0 : i32
    %c0_i32_0 = arith.constant 0 : i32
    %c0_i32_1 = arith.constant 0 : i32
    return %c0_i32, %c0_i32_0 : i32, i32
  }
  func.func @transform_5(%arg0: i32) -> (i32, i32) {
    %c0_i32 = arith.constant 0 : i32
    %c0_i32_0 = arith.constant 0 : i32
    %c0_i32_1 = arith.constant 0 : i32
    return %c0_i32, %c0_i32_0 : i32, i32
  }
  func.func @transform_6(%arg0: i32) -> (i32, i32) {
    %c0_i32 = arith.constant 0 : i32
    %c0_i32_0 = arith.constant 0 : i32
    %c0_i32_1 = arith.constant 0 : i32
    return %c0_i32, %c0_i32_0 : i32, i32
  }
  func.func @transform_7(%arg0: i32) -> (i32, i32) {
    %c0_i32 = arith.constant 0 : i32
    %c0_i32_0 = arith.constant 0 : i32
    %c0_i32_1 = arith.constant 0 : i32
    return %c0_i32, %c0_i32_0 : i32, i32
  }
  func.func @transform_8(%arg0: i32) -> (i32, i32) {
    %c0_i32 = arith.constant 0 : i32
    %c0_i32_0 = arith.constant 0 : i32
    %c0_i32_1 = arith.constant 0 : i32
    return %c0_i32, %c0_i32_0 : i32, i32
  }
  func.func @transform_9(%arg0: i32) -> (i32, i32) {
    %c0_i32 = arith.constant 0 : i32
    %c0_i32_0 = arith.constant 0 : i32
    %c0_i32_1 = arith.constant 0 : i32
    return %c0_i32, %c0_i32_0 : i32, i32
  }
  func.func @transform_10(%arg0: i32) -> (i32, i32) {
    %c0_i32 = arith.constant 0 : i32
    %c0_i32_0 = arith.constant 0 : i32
    %c0_i32_1 = arith.constant 0 : i32
    return %c0_i32, %c0_i32_0 : i32, i32
  }
  func.func @transform_11(%arg0: i32) -> (i32, i32) {
    %c0_i32 = arith.constant 0 : i32
    %c0_i32_0 = arith.constant 0 : i32
    %c0_i32_1 = arith.constant 0 : i32
    return %c0_i32, %c0_i32_0 : i32, i32
  }
  func.func @transform_12(%arg0: i32) -> (i32, i32) {
    %c0_i32 = arith.constant 0 : i32
    %c0_i32_0 = arith.constant 0 : i32
    %c0_i32_1 = arith.constant 0 : i32
    return %c0_i32, %c0_i32_0 : i32, i32
  }
  func.func @transform_13(%arg0: i32) -> (i32, i32) {
    %c0_i32 = arith.constant 0 : i32
    %c0_i32_0 = arith.constant 0 : i32
    return %arg0, %c0_i32 : i32, i32
  }
}

</mosaic_0001>

<llo_original>
// kernel: neumf_forward.1
$region0: #{neumf_forward.1}
  #allocation0 [shape = 'u32[]', space=smem, size = 0x4, offset = 0x4, fixed_abs, tag = 'smem constant byte address 0x4 - core index']
  #allocation1 [shape = 'u32[144,128]{1,0:T(1,128)}', space=vmem, size = 0x12000, scoped, tag = 'internal scratch']
  #allocation2 [shape = 'f32[1,1]{1,0:T(1,128)S(1)}', space=vmem, size = 0x200, scoped, tag = 'scoped memory for neumf_forward.1']
  #allocation3 [shape = 'f32[1,1]{1,0:T(1,128)S(1)}', space=vmem, size = 0x200, scoped, tag = 'scoped memory for neumf_forward.1']
  #allocation4 [shape = 'f32[1,1]{1,0:T(1,128)S(1)}', space=vmem, size = 0x200, scoped, tag = 'scoped memory for neumf_forward.1']
  %s0 = inlined_call_operand.vmem [shape: f32[32,256], index: 0, kind: input, shape index: {}]
  %s1 = inlined_call_operand.vmem [shape: f32[32,256], index: 1, kind: input, shape index: {}]
  %s2 = inlined_call_operand.vmem [shape: f32[17,32], index: 2, kind: input, shape index: {}]
  %s3 = inlined_call_operand.vmem [shape: f32[17,32], index: 3, kind: input, shape index: {}]
  %s4 = inlined_call_operand.vmem [shape: f32[8,16], index: 4, kind: input, shape index: {}]
  %s5 = inlined_call_operand.vmem [shape: f32[4,8], index: 5, kind: input, shape index: {}]
  %s6 = inlined_call_operand.vmem [shape: f32[1,4], index: 6, kind: input, shape index: {}]
  %s7 = inlined_call_operand.<no memory space> [shape: f32[1,1], index: 7, kind: input, shape index: {}]
  %s8 = inlined_call_operand.<no memory space> [shape: f32[1,1], index: 8, kind: input, shape index: {}]
  %s9 = inlined_call_operand.vmem [shape: f32[16,1], index: 9, kind: input, shape index: {}]
  %s10 = inlined_call_operand.vmem [shape: f32[8,1], index: 10, kind: input, shape index: {}]
  %s11 = inlined_call_operand.vmem [shape: f32[4,1], index: 11, kind: input, shape index: {}]
  %s12 = inlined_call_operand.<no memory space> [shape: f32[1,1], index: 12, kind: input, shape index: {}]
  %s13 = inlined_call_operand.hbm [shape: f32[1,256], index: 13, kind: output, shape index: {}]
  %s14 = sld [smem:[#allocation0]]
  $region62: #{neumf_forward.1} parent=0
    _
  %s16 = ssub.s32 1, %s14
  %s17 = scalar_select 0, %s16, %s14
  %v18 = vstv %s7
  %19 = vst [vmem:[#allocation2] sm:$0x1] %v18
  %v20 = vstv %s8
  %21 = vst [vmem:[#allocation3] sm:$0x1] %v20
  %v22 = vstv %s12
  %23 = vst [vmem:[#allocation4] sm:$0x1] %v22
  $region1: #{neumf_forward.1} parent=0
    #allocation5 [shape = 'u8[1024]{0}', space=vmem, size = 0x400, scoped, tag = 'output window, operand 0, single buffered']
    #allocation6 [shape = 's32[1]{0}', space=sflag, size = 0x4, scoped, tag = 'scoped memory for neumf_forward.1']
    %24 = vsyncpa [#allocation6], 0
    // Predicated region
    $region2: #{neumf_forward.1} parent=1 // pred_check
      _
    $region3: #{neumf_forward.1} parent=1 // pred_check_branch
      %26 = sbr.rel (0) target = $region5
    $region4: #{neumf_forward.1} parent=1 // pred_region
      _
    $region5: #{neumf_forward.1} parent=1 // pred_fallthru
      _
    // Predicated region
    $region6: #{neumf_forward.1} parent=1 // pred_check
      _
    $region7: #{neumf_forward.1} parent=1 // pred_check_branch
      %28 = sbr.rel (0) target = $region9
    $region8: #{neumf_forward.1} parent=1 // pred_region
      _
    $region9: #{neumf_forward.1} parent=1 // pred_fallthru
      _
    // Predicated region
    $region10: #{neumf_forward.1} parent=1 // pred_check
      _
    $region11: #{neumf_forward.1} parent=1 // pred_check_branch
      %30 = sbr.rel (0) target = $region13
    $region12: #{neumf_forward.1} parent=1 // pred_region
      _
    $region13: #{neumf_forward.1} parent=1 // pred_fallthru
      _
    // Predicated region
    $region14: #{neumf_forward.1} parent=1 // pred_check
      _
    $region15: #{neumf_forward.1} parent=1 // pred_check_branch
      %32 = sbr.rel (0) target = $region17
    $region16: #{neumf_forward.1} parent=1 // pred_region
      _
    $region17: #{neumf_forward.1} parent=1 // pred_fallthru
      _
    // Predicated region
    $region18: #{neumf_forward.1} parent=1 // pred_check
      _
    $region19: #{neumf_forward.1} parent=1 // pred_check_branch
      %34 = sbr.rel (0) target = $region21
    $region20: #{neumf_forward.1} parent=1 // pred_region
      _
    $region21: #{neumf_forward.1} parent=1 // pred_fallthru
      _
    // Predicated region
    $region22: #{neumf_forward.1} parent=1 // pred_check
      _
    $region23: #{neumf_forward.1} parent=1 // pred_check_branch
      %36 = sbr.rel (0) target = $region25
    $region24: #{neumf_forward.1} parent=1 // pred_region
      _
    $region25: #{neumf_forward.1} parent=1 // pred_fallthru
      _
    // Predicated region
    $region26: #{neumf_forward.1} parent=1 // pred_check
      _
    $region27: #{neumf_forward.1} parent=1 // pred_check_branch
      %38 = sbr.rel (0) target = $region29
    $region28: #{neumf_forward.1} parent=1 // pred_region
      _
    $region29: #{neumf_forward.1} parent=1 // pred_fallthru
      _
    // Predicated region
    $region30: #{neumf_forward.1} parent=1 // pred_check
      _
    $region31: #{neumf_forward.1} parent=1 // pred_check_branch
      %40 = sbr.rel (0) target = $region33
    $region32: #{neumf_forward.1} parent=1 // pred_region
      _
    $region33: #{neumf_forward.1} parent=1 // pred_fallthru
      _
    // Predicated region
    $region34: #{neumf_forward.1} parent=1 // pred_check
      _
    $region35: #{neumf_forward.1} parent=1 // pred_check_branch
      %42 = sbr.rel (0) target = $region37
    $region36: #{neumf_forward.1} parent=1 // pred_region
      _
    $region37: #{neumf_forward.1} parent=1 // pred_fallthru
      _
    // Predicated region
    $region38: #{neumf_forward.1} parent=1 // pred_check
      _
    $region39: #{neumf_forward.1} parent=1 // pred_check_branch
      %44 = sbr.rel (0) target = $region41
    $region40: #{neumf_forward.1} parent=1 // pred_region
      _
    $region41: #{neumf_forward.1} parent=1 // pred_fallthru
      _
    // Predicated region
    $region42: #{neumf_forward.1} parent=1 // pred_check
      _
    $region43: #{neumf_forward.1} parent=1 // pred_check_branch
      %46 = sbr.rel (0) target = $region45
    $region44: #{neumf_forward.1} parent=1 // pred_region
      _
    $region45: #{neumf_forward.1} parent=1 // pred_fallthru
      _
    // Predicated region
    $region46: #{neumf_forward.1} parent=1 // pred_check
      _
    $region47: #{neumf_forward.1} parent=1 // pred_check_branch
      %48 = sbr.rel (0) target = $region49
    $region48: #{neumf_forward.1} parent=1 // pred_region
      _
    $region49: #{neumf_forward.1} parent=1 // pred_fallthru
      _
    // Predicated region
    $region50: #{neumf_forward.1} parent=1 // pred_check
      _
    $region51: #{neumf_forward.1} parent=1 // pred_check_branch
      %50 = sbr.rel (0) target = $region53
    $region52: #{neumf_forward.1} parent=1 // pred_region
      _
    $region53: #{neumf_forward.1} parent=1 // pred_fallthru
      _
    %v51 = vld [vmem:[%s2] sm:$0xff]
    %v52 = vld [vmem:[%s2 + $0x8] sm:$0xff]
    %v53 = vld [vmem:[%s2 + $0x10] sm:$0x1]
    %v54 = vld [vmem:[%s0] sm:$0xff]
    %v55 = vld [vmem:[%s0 + $0x8] sm:$0xff]
    %v56 = vld [vmem:[%s0 + $0x10] sm:$0xff]
    %v57 = vld [vmem:[%s0 + $0x18] sm:$0xff]
    %v58 = vld [vmem:[%s0 + $0x20] sm:$0xff]
    %v59 = vld [vmem:[%s0 + $0x28] sm:$0xff]
    %v60 = vld [vmem:[%s0 + $0x30] sm:$0xff]
    %v61 = vld [vmem:[%s0 + $0x38] sm:$0xff]
    %vm62 = vcmask 261120
    %v64 = vsel %vm62, %v51, 0
    %v67 = vsel %vm62, %v52, 0
    %v70 = vsel %vm62, %v53, 0
    %72 = vmatprep.subr.mxu0 0.0
    %73 = vmatpush1.msra.mxu0 0.0
    %74 = vmatprep.subr.mxu0 0.0
    %75 = vmatpush1.msra.mxu0 0.0
    %76 = vmatprep.subr.mxu0 0.0
    %77 = vmatpush1.msra.mxu0 0.0
    %78 = vmatprep.subr.mxu0 0.0
    %79 = vmatpush1.msra.mxu0 0.0
    %80 = vmatprep.subr.mxu0 0.0
    %81 = vmatpush1.msra.mxu0 0.0
    %82 = vmatprep.subr.mxu0 0.0
    %83 = vmatpush1.msra.mxu0 0.0
    %84 = vmatprep.subr.mxu0 0.0
    %85 = vmatpush1.msra.mxu0 0.0
    %86 = vmatprep.subr.mxu0 0.0
    %87 = vmatpush1.msra.mxu0 0.0
    %88 = vmatprep.subr.mxu0 0.0
    %89 = vmatpush1.msra.mxu0 0.0
    %90 = vmatprep.subr.mxu0 0.0
    %91 = vmatpush1.msra.mxu0 0.0
    %92 = vmatprep.subr.mxu0 0.0
    %93 = vmatpush1.msra.mxu0 0.0
    %94 = vmatprep.subr.mxu0 0.0
    %95 = vmatpush1.msra.mxu0 0.0
    %96 = vmatprep.subr.mxu0 %v61
    %97 = vmatpush1.msra.mxu0 %v60
    %98 = vmatprep.subr.mxu0 %v59
    %99 = vmatpush1.msra.mxu0 %v58
    %100 = vmatprep.subr.mxu0 %v57
    %101 = vmatpush1.msra.mxu0 %v56
    %102 = vmatprep.subr.mxu0 %v55
    %103 = vmatpush1.msra.mxu0 %v54
    %104 = vmatprep.subr.mxu0 0.0
    %105 = vmatpush2.msra.mxu0 0.0
    %106 = vmatprep.subr.mxu0 0.0
    %107 = vmatpush2.msra.mxu0 0.0
    %108 = vmatprep.subr.mxu0 0.0
    %109 = vmatpush2.msra.mxu0 0.0
    %110 = vmatprep.subr.mxu0 0.0
    %111 = vmatpush2.msra.mxu0 0.0
    %112 = vmatprep.subr.mxu0 0.0
    %113 = vmatpush2.msra.mxu0 0.0
    %114 = vmatprep.subr.mxu0 0.0
    %115 = vmatpush2.msra.mxu0 0.0
    %116 = vmatprep.subr.mxu0 0.0
    %117 = vmatpush2.msra.mxu0 0.0
    %118 = vmatprep.subr.mxu0 0.0
    %119 = vmatpush2.msra.mxu0 0.0
    %120 = vmatprep.subr.mxu0 0.0
    %121 = vmatpush2.msra.mxu0 0.0
    %122 = vmatprep.subr.mxu0 0.0
    %123 = vmatpush2.msra.mxu0 0.0
    %124 = vmatprep.subr.mxu0 0.0
    %125 = vmatpush2.msra.mxu0 0.0
    %126 = vmatprep.subr.mxu0 0.0
    %127 = vmatpush2.msra.mxu0 0.0
    %128 = vmatprep.subr.mxu0 0.0
    %129 = vmatpush2.msra.mxu0 0.0
    %130 = vmatprep.subr.mxu0 0.0
    %131 = vmatpush2.msra.mxu0 0.0
    %132 = vmatprep.subr.mxu0 0.0
    %133 = vmatpush2.msra.mxu0 0.0
    %134 = vmatprep.subr.mxu0 0.0
    %135 = vmatpush2.msra.mxu0 0.0
    %136 = vmatprep.mubr.f32.mxu0 0.0
    %137 = vmatmul.mubr.f32.gmra.mxu0 %v64
    %v138 = vpop.f32.mrf.mxu0
    %v139 = vadd.f32 0.0, %v138
    %v140 = vpop.f32.mrf.mxu0
    %v141 = vadd.f32 0.0, %v140
    %142 = vmatprep.mubr.f32.mxu0 0.0
    %143 = vmatmul.mubr.f32.gmra.mxu0 %v67
    %v144 = vpop.f32.mrf.mxu0
    %v145 = vadd.f32 0.0, %v144
    %v146 = vpop.f32.mrf.mxu0
    %v147 = vadd.f32 0.0, %v146
    %148 = vmatprep.mubr.f32.mxu0 0.0
    %149 = vmatmul.mubr.f32.gmra.mxu0 %v70
    %v150 = vpop.f32.mrf.mxu0
    %v151 = vadd.f32 0.0, %v150
    %v152 = vpop.f32.mrf.mxu0
    %v153 = vadd.f32 0.0, %v152
    %154 = vdwg.mxu0
    %v155 = vld [vmem:[%s3] sm:$0xff]
    %v156 = vld [vmem:[%s3 + $0x8] sm:$0xff]
    %v157 = vld [vmem:[%s3 + $0x10] sm:$0x1]
    %v158 = vld [vmem:[%s1] sm:$0xff]
    %v159 = vld [vmem:[%s1 + $0x8] sm:$0xff]
    %v160 = vld [vmem:[%s1 + $0x10] sm:$0xff]
    %v161 = vld [vmem:[%s1 + $0x18] sm:$0xff]
    %v162 = vld [vmem:[%s1 + $0x20] sm:$0xff]
    %v163 = vld [vmem:[%s1 + $0x28] sm:$0xff]
    %v164 = vld [vmem:[%s1 + $0x30] sm:$0xff]
    %v165 = vld [vmem:[%s1 + $0x38] sm:$0xff]
    %v167 = vsel %vm62, %v155, 0
    %v170 = vsel %vm62, %v156, 0
    %v173 = vsel %vm62, %v157, 0
    %175 = vmatprep.subr.mxu0 0.0
    %176 = vmatpush1.msra.mxu0 0.0
    %177 = vmatprep.subr.mxu0 0.0
    %178 = vmatpush1.msra.mxu0 0.0
    %179 = vmatprep.subr.mxu0 0.0
    %180 = vmatpush1.msra.mxu0 0.0
    %181 = vmatprep.subr.mxu0 0.0
    %182 = vmatpush1.msra.mxu0 0.0
    %183 = vmatprep.subr.mxu0 0.0
    %184 = vmatpush1.msra.mxu0 0.0
    %185 = vmatprep.subr.mxu0 0.0
    %186 = vmatpush1.msra.mxu0 0.0
    %187 = vmatprep.subr.mxu0 0.0
    %188 = vmatpush1.msra.mxu0 0.0
    %189 = vmatprep.subr.mxu0 0.0
    %190 = vmatpush1.msra.mxu0 0.0
    %191 = vmatprep.subr.mxu0 0.0
    %192 = vmatpush1.msra.mxu0 0.0
    %193 = vmatprep.subr.mxu0 0.0
    %194 = vmatpush1.msra.mxu0 0.0
    %195 = vmatprep.subr.mxu0 0.0
    %196 = vmatpush1.msra.mxu0 0.0
    %197 = vmatprep.subr.mxu0 0.0
    %198 = vmatpush1.msra.mxu0 0.0
    %199 = vmatprep.subr.mxu0 %v165
    %200 = vmatpush1.msra.mxu0 %v164
    %201 = vmatprep.subr.mxu0 %v163
    %202 = vmatpush1.msra.mxu0 %v162
    %203 = vmatprep.subr.mxu0 %v161
    %204 = vmatpush1.msra.mxu0 %v160
    %205 = vmatprep.subr.mxu0 %v159
    %206 = vmatpush1.msra.mxu0 %v158
    %207 = vmatprep.subr.mxu0 0.0
    %208 = vmatpush2.msra.mxu0 0.0
    %209 = vmatprep.subr.mxu0 0.0
    %210 = vmatpush2.msra.mxu0 0.0
    %211 = vmatprep.subr.mxu0 0.0
    %212 = vmatpush2.msra.mxu0 0.0
    %213 = vmatprep.subr.mxu0 0.0
    %214 = vmatpush2.msra.mxu0 0.0
    %215 = vmatprep.subr.mxu0 0.0
    %216 = vmatpush2.msra.mxu0 0.0
    %217 = vmatprep.subr.mxu0 0.0
    %218 = vmatpush2.msra.mxu0 0.0
    %219 = vmatprep.subr.mxu0 0.0
    %220 = vmatpush2.msra.mxu0 0.0
    %221 = vmatprep.subr.mxu0 0.0
    %222 = vmatpush2.msra.mxu0 0.0
    %223 = vmatprep.subr.mxu0 0.0
    %224 = vmatpush2.msra.mxu0 0.0
    %225 = vmatprep.subr.mxu0 0.0
    %226 = vmatpush2.msra.mxu0 0.0
    %227 = vmatprep.subr.mxu0 0.0
    %228 = vmatpush2.msra.mxu0 0.0
    %229 = vmatprep.subr.mxu0 0.0
    %230 = vmatpush2.msra.mxu0 0.0
    %231 = vmatprep.subr.mxu0 0.0
    %232 = vmatpush2.msra.mxu0 0.0
    %233 = vmatprep.subr.mxu0 0.0
    %234 = vmatpush2.msra.mxu0 0.0
    %235 = vmatprep.subr.mxu0 0.0
    %236 = vmatpush2.msra.mxu0 0.0
    %237 = vmatprep.subr.mxu0 0.0
    %238 = vmatpush2.msra.mxu0 0.0
    %239 = vmatprep.mubr.f32.mxu0 0.0
    %240 = vmatmul.mubr.f32.gmra.mxu0 %v167
    %v241 = vpop.f32.mrf.mxu0
    %v242 = vadd.f32 0.0, %v241
    %v243 = vpop.f32.mrf.mxu0
    %v244 = vadd.f32 0.0, %v243
    %245 = vmatprep.mubr.f32.mxu0 0.0
    %246 = vmatmul.mubr.f32.gmra.mxu0 %v170
    %v247 = vpop.f32.mrf.mxu0
    %v248 = vadd.f32 0.0, %v247
    %v249 = vpop.f32.mrf.mxu0
    %v250 = vadd.f32 0.0, %v249
    %251 = vmatprep.mubr.f32.mxu0 0.0
    %252 = vmatmul.mubr.f32.gmra.mxu0 %v173
    %v253 = vpop.f32.mrf.mxu0
    %v254 = vadd.f32 0.0, %v253
    %v255 = vpop.f32.mrf.mxu0
    %v256 = vadd.f32 0.0, %v255
    %257 = vdwg.mxu0
    %v258 = vld [vmem:[#allocation2] sm:$0x1]
    %260 = vset.pattern.permute.xlu0 0
    %261 = vperm.xlu0 %260, %v258
    %v262 = vpop.permute.xlu0 %261
    %v264 = vlaneseq
    %v265 = vshrl.u32 %v264, 7
    %v266 = vsub.s32 0, %v265
    %v267 = vrot.slane %v262, %v266
    %v268 = vadd.f32 %v151, %v267
    %v269 = vadd.f32 %v153, %v267
    %v270 = vld [vmem:[#allocation3] sm:$0x1]
    %272 = vset.pattern.permute.xlu0 0
    %273 = vperm.xlu0 %272, %v270
    %v274 = vpop.permute.xlu0 %273
    %v276 = vlaneseq
    %v277 = vshrl.u32 %v276, 7
    %v278 = vsub.s32 0, %v277
    %v279 = vrot.slane %v274, %v278
    %v280 = vadd.f32 %v254, %v279
    %v281 = vadd.f32 %v256, %v279
    %v282 = vmul.f32 %v268, %v280
    %v283 = vmul.f32 %v269, %v281
    %v284 = vadd.f32 %v139, %v242
    %v285 = vadd.f32 %v141, %v244
    %v286 = vadd.f32 %v145, %v248
    %v287 = vadd.f32 %v147, %v250
    %v288 = vld [vmem:[%s9] sm:$0xff]
    %v289 = vld [vmem:[%s9 + $0x8] sm:$0xff]
    %291 = vset.pattern.permute.xlu0 0
    %292 = vperm.xlu0 %291, %v288
    %v293 = vpop.permute.xlu0 %292
    %296 = vset.pattern.permute.xlu0 0
    %297 = vperm.xlu0 %296, %v289
    %v298 = vpop.permute.xlu0 %297
    %v300 = vadd.f32 %v284, %v293
    %v301 = vadd.f32 %v285, %v293
    %v302 = vadd.f32 %v286, %v298
    %v303 = vadd.f32 %v287, %v298
    %v304 = vmax.f32 %v300, 0.0
    %v305 = vmax.f32 %v301, 0.0
    %v306 = vmax.f32 %v302, 0.0
    %v307 = vmax.f32 %v303, 0.0
    %v308 = vld [vmem:[%s4] sm:$0xff]
    %v309 = vld [vmem:[%s10] sm:$0xff]
    %311 = vset.pattern.permute.xlu0 0
    %312 = vperm.xlu0 %311, %v309
    %v313 = vpop.permute.xlu0 %312
    %vm315 = vcmask 130048
    %v317 = vsel %vm315, %v308, 0
    %319 = vmatprep.subr.mxu0 0.0
    %320 = vmatpush1.msra.mxu0 0.0
    %321 = vmatprep.subr.mxu0 0.0
    %322 = vmatpush1.msra.mxu0 0.0
    %323 = vmatprep.subr.mxu0 0.0
    %324 = vmatpush1.msra.mxu0 0.0
    %325 = vmatprep.subr.mxu0 0.0
    %326 = vmatpush1.msra.mxu0 0.0
    %327 = vmatprep.subr.mxu0 0.0
    %328 = vmatpush1.msra.mxu0 0.0
    %329 = vmatprep.subr.mxu0 0.0
    %330 = vmatpush1.msra.mxu0 0.0
    %331 = vmatprep.subr.mxu0 0.0
    %332 = vmatpush1.msra.mxu0 0.0
    %333 = vmatprep.subr.mxu0 0.0
    %334 = vmatpush1.msra.mxu0 0.0
    %335 = vmatprep.subr.mxu0 0.0
    %336 = vmatpush1.msra.mxu0 0.0
    %337 = vmatprep.subr.mxu0 0.0
    %338 = vmatpush1.msra.mxu0 0.0
    %339 = vmatprep.subr.mxu0 0.0
    %340 = vmatpush1.msra.mxu0 0.0
    %341 = vmatprep.subr.mxu0 0.0
    %342 = vmatpush1.msra.mxu0 0.0
    %343 = vmatprep.subr.mxu0 0.0
    %344 = vmatpush1.msra.mxu0 0.0
    %345 = vmatprep.subr.mxu0 0.0
    %346 = vmatpush1.msra.mxu0 0.0
    %347 = vmatprep.subr.mxu0 %v307
    %348 = vmatpush1.msra.mxu0 %v306
    %349 = vmatprep.subr.mxu0 %v305
    %350 = vmatpush1.msra.mxu0 %v304
    %351 = vmatprep.subr.mxu0 0.0
    %352 = vmatpush2.msra.mxu0 0.0
    %353 = vmatprep.subr.mxu0 0.0
    %354 = vmatpush2.msra.mxu0 0.0
    %355 = vmatprep.subr.mxu0 0.0
    %356 = vmatpush2.msra.mxu0 0.0
    %357 = vmatprep.subr.mxu0 0.0
    %358 = vmatpush2.msra.mxu0 0.0
    %359 = vmatprep.subr.mxu0 0.0
    %360 = vmatpush2.msra.mxu0 0.0
    %361 = vmatprep.subr.mxu0 0.0
    %362 = vmatpush2.msra.mxu0 0.0
    %363 = vmatprep.subr.mxu0 0.0
    %364 = vmatpush2.msra.mxu0 0.0
    %365 = vmatprep.subr.mxu0 0.0
    %366 = vmatpush2.msra.mxu0 0.0
    %367 = vmatprep.subr.mxu0 0.0
    %368 = vmatpush2.msra.mxu0 0.0
    %369 = vmatprep.subr.mxu0 0.0
    %370 = vmatpush2.msra.mxu0 0.0
    %371 = vmatprep.subr.mxu0 0.0
    %372 = vmatpush2.msra.mxu0 0.0
    %373 = vmatprep.subr.mxu0 0.0
    %374 = vmatpush2.msra.mxu0 0.0
    %375 = vmatprep.subr.mxu0 0.0
    %376 = vmatpush2.msra.mxu0 0.0
    %377 = vmatprep.subr.mxu0 0.0
    %378 = vmatpush2.msra.mxu0 0.0
    %379 = vmatprep.subr.mxu0 0.0
    %380 = vmatpush2.msra.mxu0 0.0
    %381 = vmatprep.subr.mxu0 0.0
    %382 = vmatpush2.msra.mxu0 0.0
    %383 = vmatprep.mubr.f32.mxu0 0.0
    %384 = vmatmul.mubr.f32.gmra.mxu0 %v317
    %v385 = vpop.f32.mrf.mxu0
    %v386 = vadd.f32 %v313, %v385
    %v387 = vpop.f32.mrf.mxu0
    %v388 = vadd.f32 %v313, %v387
    %389 = vdwg.mxu0
    %v390 = vmax.f32 %v386, 0.0
    %v391 = vmax.f32 %v388, 0.0
    %v392 = vld [vmem:[%s5] sm:$0xf]
    %v393 = vld [vmem:[%s11] sm:$0xf]
    %395 = vset.pattern.permute.xlu0 0
    %396 = vperm.xlu0 %395, %v393
    %v397 = vpop.permute.xlu0 %396
    %vm399 = vcmask 64512
    %v401 = vsel %vm399, %v392, 0
    %403 = vmatprep.subr.mxu0 0.0
    %404 = vmatpush1.msra.mxu0 0.0
    %405 = vmatprep.subr.mxu0 0.0
    %406 = vmatpush1.msra.mxu0 0.0
    %407 = vmatprep.subr.mxu0 0.0
    %408 = vmatpush1.msra.mxu0 0.0
    %409 = vmatprep.subr.mxu0 0.0
    %410 = vmatpush1.msra.mxu0 0.0
    %411 = vmatprep.subr.mxu0 0.0
    %412 = vmatpush1.msra.mxu0 0.0
    %413 = vmatprep.subr.mxu0 0.0
    %414 = vmatpush1.msra.mxu0 0.0
    %415 = vmatprep.subr.mxu0 0.0
    %416 = vmatpush1.msra.mxu0 0.0
    %417 = vmatprep.subr.mxu0 0.0
    %418 = vmatpush1.msra.mxu0 0.0
    %419 = vmatprep.subr.mxu0 0.0
    %420 = vmatpush1.msra.mxu0 0.0
    %421 = vmatprep.subr.mxu0 0.0
    %422 = vmatpush1.msra.mxu0 0.0
    %423 = vmatprep.subr.mxu0 0.0
    %424 = vmatpush1.msra.mxu0 0.0
    %425 = vmatprep.subr.mxu0 0.0
    %426 = vmatpush1.msra.mxu0 0.0
    %427 = vmatprep.subr.mxu0 0.0
    %428 = vmatpush1.msra.mxu0 0.0
    %429 = vmatprep.subr.mxu0 0.0
    %430 = vmatpush1.msra.mxu0 0.0
    %431 = vmatprep.subr.mxu0 0.0
    %432 = vmatpush1.msra.mxu0 0.0
    %433 = vmatprep.subr.mxu0 %v391
    %434 = vmatpush1.msra.mxu0 %v390
    %435 = vmatprep.subr.mxu0 0.0
    %436 = vmatpush2.msra.mxu0 0.0
    %437 = vmatprep.subr.mxu0 0.0
    %438 = vmatpush2.msra.mxu0 0.0
    %439 = vmatprep.subr.mxu0 0.0
    %440 = vmatpush2.msra.mxu0 0.0
    %441 = vmatprep.subr.mxu0 0.0
    %442 = vmatpush2.msra.mxu0 0.0
    %443 = vmatprep.subr.mxu0 0.0
    %444 = vmatpush2.msra.mxu0 0.0
    %445 = vmatprep.subr.mxu0 0.0
    %446 = vmatpush2.msra.mxu0 0.0
    %447 = vmatprep.subr.mxu0 0.0
    %448 = vmatpush2.msra.mxu0 0.0
    %449 = vmatprep.subr.mxu0 0.0
    %450 = vmatpush2.msra.mxu0 0.0
    %451 = vmatprep.subr.mxu0 0.0
    %452 = vmatpush2.msra.mxu0 0.0
    %453 = vmatprep.subr.mxu0 0.0
    %454 = vmatpush2.msra.mxu0 0.0
    %455 = vmatprep.subr.mxu0 0.0
    %456 = vmatpush2.msra.mxu0 0.0
    %457 = vmatprep.subr.mxu0 0.0
    %458 = vmatpush2.msra.mxu0 0.0
    %459 = vmatprep.subr.mxu0 0.0
    %460 = vmatpush2.msra.mxu0 0.0
    %461 = vmatprep.subr.mxu0 0.0
    %462 = vmatpush2.msra.mxu0 0.0
    %463 = vmatprep.subr.mxu0 0.0
    %464 = vmatpush2.msra.mxu0 0.0
    %465 = vmatprep.subr.mxu0 0.0
    %466 = vmatpush2.msra.mxu0 0.0
    %467 = vmatprep.mubr.f32.mxu0 0.0
    %468 = vmatmul.mubr.f32.gmra.mxu0 %v401
    %v469 = vpop.f32.mrf.mxu0
    %v470 = vadd.f32 %v397, %v469
    %v471 = vpop.f32.mrf.mxu0
    %v472 = vadd.f32 %v397, %v471
    %473 = vdwg.mxu0
    %v474 = vmax.f32 %v470, 0.0
    %v475 = vmax.f32 %v472, 0.0
    %v476 = vld [vmem:[%s6] sm:$0x1]
    %vm477 = vcmask 31744
    %v479 = vsel %vm477, %v476, 0
    %vm481 = vcmask 1043456
    %v483 = vsel %vm481, %v474, 0
    %v486 = vsel %vm481, %v475, 0
    %488 = vmatprep.subr.mxu0 0.0
    %489 = vmatpush1.msra.mxu0 0.0
    %490 = vmatprep.subr.mxu0 0.0
    %491 = vmatpush1.msra.mxu0 0.0
    %492 = vmatprep.subr.mxu0 0.0
    %493 = vmatpush1.msra.mxu0 0.0
    %494 = vmatprep.subr.mxu0 0.0
    %495 = vmatpush1.msra.mxu0 0.0
    %496 = vmatprep.subr.mxu0 0.0
    %497 = vmatpush1.msra.mxu0 0.0
    %498 = vmatprep.subr.mxu0 0.0
    %499 = vmatpush1.msra.mxu0 0.0
    %500 = vmatprep.subr.mxu0 0.0
    %501 = vmatpush1.msra.mxu0 0.0
    %502 = vmatprep.subr.mxu0 0.0
    %503 = vmatpush1.msra.mxu0 0.0
    %504 = vmatprep.subr.mxu0 0.0
    %505 = vmatpush1.msra.mxu0 0.0
    %506 = vmatprep.subr.mxu0 0.0
    %507 = vmatpush1.msra.mxu0 0.0
    %508 = vmatprep.subr.mxu0 0.0
    %509 = vmatpush1.msra.mxu0 0.0
    %510 = vmatprep.subr.mxu0 0.0
    %511 = vmatpush1.msra.mxu0 0.0
    %512 = vmatprep.subr.mxu0 0.0
    %513 = vmatpush1.msra.mxu0 0.0
    %514 = vmatprep.subr.mxu0 0.0
    %515 = vmatpush1.msra.mxu0 0.0
    %516 = vmatprep.subr.mxu0 0.0
    %517 = vmatpush1.msra.mxu0 0.0
    %518 = vmatprep.subr.mxu0 %v486
    %519 = vmatpush1.msra.mxu0 %v483
    %520 = vmatprep.subr.mxu0 0.0
    %521 = vmatpush2.msra.mxu0 0.0
    %522 = vmatprep.subr.mxu0 0.0
    %523 = vmatpush2.msra.mxu0 0.0
    %524 = vmatprep.subr.mxu0 0.0
    %525 = vmatpush2.msra.mxu0 0.0
    %526 = vmatprep.subr.mxu0 0.0
    %527 = vmatpush2.msra.mxu0 0.0
    %528 = vmatprep.subr.mxu0 0.0
    %529 = vmatpush2.msra.mxu0 0.0
    %530 = vmatprep.subr.mxu0 0.0
    %531 = vmatpush2.msra.mxu0 0.0
    %532 = vmatprep.subr.mxu0 0.0
    %533 = vmatpush2.msra.mxu0 0.0
    %534 = vmatprep.subr.mxu0 0.0
    %535 = vmatpush2.msra.mxu0 0.0
    %536 = vmatprep.subr.mxu0 0.0
    %537 = vmatpush2.msra.mxu0 0.0
    %538 = vmatprep.subr.mxu0 0.0
    %539 = vmatpush2.msra.mxu0 0.0
    %540 = vmatprep.subr.mxu0 0.0
    %541 = vmatpush2.msra.mxu0 0.0
    %542 = vmatprep.subr.mxu0 0.0
    %543 = vmatpush2.msra.mxu0 0.0
    %544 = vmatprep.subr.mxu0 0.0
    %545 = vmatpush2.msra.mxu0 0.0
    %546 = vmatprep.subr.mxu0 0.0
    %547 = vmatpush2.msra.mxu0 0.0
    %548 = vmatprep.subr.mxu0 0.0
    %549 = vmatpush2.msra.mxu0 0.0
    %550 = vmatprep.subr.mxu0 0.0
    %551 = vmatpush2.msra.mxu0 0.0
    %552 = vmatprep.mubr.f32.mxu0 0.0
    %553 = vmatmul.mubr.f32.gmra.mxu0 %v479
    %v554 = vpop.f32.mrf.mxu0
    %v555 = vadd.f32 0.0, %v554
    %v556 = vpop.f32.mrf.mxu0
    %v557 = vadd.f32 0.0, %v556
    %558 = vdwg.mxu0
    %v559 = vadd.f32 %v282, %v555
    %v560 = vadd.f32 %v283, %v557
    %v561 = vld [vmem:[#allocation4] sm:$0x1]
    %563 = vset.pattern.permute.xlu0 0
    %564 = vperm.xlu0 %563, %v561
    %v565 = vpop.permute.xlu0 %564
    %v567 = vlaneseq
    %v568 = vshrl.u32 %v567, 7
    %v569 = vsub.s32 0, %v568
    %v570 = vrot.slane %v565, %v569
    %v571 = vadd.f32 %v559, %v570
    %v572 = vadd.f32 %v560, %v570
    %v573 = vxor.u32 %v571, 2147483648
    %v574 = vxor.u32 %v572, 2147483648
    %v575 = vmul.f32 %v573, 1.442695
    %v576 = vpow.pop %v575
    %v577 = vmul.f32 %v574, 1.442695
    %v578 = vpow.pop %v577
    %v579 = vadd.f32 %v576, 1.0
    %v580 = vadd.f32 %v578, 1.0
    %v581 = vrcp.pop %v579
    %v582 = vmul.f32 1.0, %v581
    %v583 = vrcp.pop %v580
    %v584 = vmul.f32 1.0, %v583
    %v587 = vcombine.low %v582, %v584
    %v589 = vunpack.c.l.s4 1966171168
    %v590 = vunpack.c.0.s8 %v589
    %v591 = vlaneseq
    %v592 = vshrl.u32 %v591, 7
    %v593 = vsub.s32 %v590, %v592
    %v594 = vrot.slane %v587, %v593
    %v596 = vunpack.c.l.s4 1966171168
    %v597 = vunpack.c.0.s8 %v596
    %v598 = vlaneseq
    %v599 = vshrl.u32 %v598, 7
    %v600 = vsub.s32 %v597, %v599
    %v601 = vrot.slane %v594, %v600
    %v603 = vlaneseq
    %vm604 = vcmp.ge.s32.totalorder %v603, 0
    %vm605 = vcmp.lt.s32.totalorder %v603, 256
    %vm606 = vmand %vm604, %vm605
    %607 = vst.msk [vmem:[#allocation5] sm:$0x3] %vm606, %v601
    // Predicated region
    $region54: #{neumf_forward.1} parent=1 // pred_check
      _
    $region55: #{neumf_forward.1} parent=1 // pred_check_branch
      %609 = sbr.rel (0) target = $region57
    $region56: #{neumf_forward.1} parent=1 // pred_region
      %s611 = ssub.s32 32, 32
      %612 = vsyncadd [#allocation6], %s611
      %s614 = sshll.u32 [#allocation5], 4
      %s615 = int_to_ptr.vmem [resolvable:$true] %s614
      %617 = dma.vmem_to_hbm [thread:$0]  %s615, 32, %s13, [#allocation6]
    $region57: #{neumf_forward.1} parent=1 // pred_fallthru
      _
    // Predicated region
    $region58: #{neumf_forward.1} parent=1 // pred_check
      _
    $region59: #{neumf_forward.1} parent=1 // pred_check_branch
      %619 = sbr.rel (0) target = $region61
    $region60: #{neumf_forward.1} parent=1 // pred_region
      %620 = dma.done [#allocation6], 32
    $region61: #{neumf_forward.1} parent=1 // pred_fallthru
      _
    %621 = vsyncpa [#allocation6], 1

</llo_original>
